<compile_context>
chip_gen: v6e
topology: v6e:2x2x1
jax: 0.10.0
libtpu: 0.0.40
codegen_flags: <defaults>
</compile_context>

<pallas_src>
import functools
import math

import jax
import jax.numpy as jnp
from jax import lax
from jax.experimental import pallas as pl
from jax.experimental.pallas import tpu as pltpu

_EPS = 1e-5            # bn / in / gn / layer eps (PyTorch default)
_PIXEL_EPS = 1e-12     # F.normalize eps
_VMEM_LIMIT_BYTES = 32 * 1024 * 1024   # explicit scoped-VMEM request (safe on v5e/v6e/v7x)
_HARD_CAP_BYTES = 4 * 1024 * 1024      # minimal single-pass block above this -> two-pass path
_FORCE_TWO_PASS = False                # test hook: force the two-pass fallback


def _cdiv(a, b):
    return -(-a // b)


def _round_up(v, m):
    return _cdiv(v, m) * m


@functools.lru_cache(maxsize=1)
def _target_block_bytes():
    """~2 MiB blocks on v5e, ~4 MiB on v6e/v7x (per-generation block budget)."""
    try:
        kind = jax.devices()[0].device_kind.lower()
    except Exception:
        return 2 * 1024 * 1024
    if "v5 lite" in kind or "v5e" in kind or "v5litepod" in kind:
        return 2 * 1024 * 1024
    return 4 * 1024 * 1024


def _cparams(*sem):
    return pltpu.CompilerParams(dimension_semantics=sem,
                                vmem_limit_bytes=_VMEM_LIMIT_BYTES)


def _cost(nelems, itemsize, flops_per_elem=6, transcendentals=0):
    return pl.CostEstimate(flops=flops_per_elem * nelems,
                           transcendentals=transcendentals,
                           bytes_accessed=2 * nelems * itemsize)


def _pick_tile(extent, unit_bytes, multiple, target_bytes, min_blocks=4):
    """Tile along one independent axis: a multiple of `multiple` (or the full
    extent when it is small), sized to ~target_bytes, and capped so the grid
    has at least `min_blocks` steps when the extent allows it."""
    extent = int(extent)
    if extent <= multiple:
        return extent
    t = max(1, int(target_bytes) // max(int(unit_bytes), 1))
    t = max(multiple, (t // multiple) * multiple)
    cap = _round_up(_cdiv(extent, max(min_blocks, 1)), multiple)
    t = min(t, cap)
    if t >= extent:
        return extent
    return t


def _pick_fallback_tiles(rows, cols, target_bytes):
    """(row_tile, col_tile) for the two-pass kernels: minimal sublane tile,
    lane axis sized to the block budget (multiple of 128 or full)."""
    tr = rows if rows < 8 else 8
    tcol = max(1, target_bytes // (tr * 4))
    tcol = max(128, (tcol // 128) * 128)
    if tcol >= cols:
        return tr, cols
    return tr, tcol


# --------------------------------------------------------------------------- single-pass kernels

def _rownorm_kernel(x_ref, o_ref, *, eps):
    """InstanceNorm: per-row stats over the lane axis, no affine."""
    x = x_ref[...].astype(jnp.float32)                       # (TR, L)
    inv = 1.0 / x.shape[-1]
    mean = jnp.sum(x, axis=-1, keepdims=True) * inv
    ex2 = jnp.sum(x * x, axis=-1, keepdims=True) * inv
    var = jnp.maximum(ex2 - mean * mean, 0.0)
    scale = lax.rsqrt(var + eps)                             # per-row
    o_ref[...] = (x * scale - mean * scale).astype(o_ref.dtype)


def _layernorm_kernel(x_ref, w_ref, b_ref, o_ref, *, eps):
    x = x_ref[...].astype(jnp.float32)                       # (TR, L)
    w = w_ref[...]                                           # (1, L) f32
    b = b_ref[...]
    inv = 1.0 / x.shape[-1]
    mean = jnp.sum(x, axis=-1, keepdims=True) * inv
    ex2 = jnp.sum(x * x, axis=-1, keepdims=True) * inv
    var = jnp.maximum(ex2 - mean * mean, 0.0)
    rstd = lax.rsqrt(var + eps)
    o_ref[...] = ((x * rstd - mean * rstd) * w + b).astype(o_ref.dtype)


def _batchnorm_kernel(x_ref, w_ref, b_ref, o_ref, *, eps):
    x = x_ref[...].astype(jnp.float32)                       # (N, TC, HW)
    n, _, hw = x.shape
    inv = 1.0 / (n * hw)
    s = jnp.sum(jnp.sum(x, axis=2, keepdims=True), axis=0, keepdims=True)
    q = jnp.sum(jnp.sum(x * x, axis=2, keepdims=True), axis=0, keepdims=True)
    mean = s * inv                                           # (1, TC, 1)
    var = jnp.maximum(q * inv - mean * mean, 0.0)
    w = w_ref[...]                                           # (1, TC, 1) f32
    b = b_ref[...]
    scale = lax.rsqrt(var + eps) * w
    shift = b - mean * scale
    o_ref[...] = (x * scale + shift).astype(o_ref.dtype)


def _groupnorm_kernel(x_ref, w_ref, b_ref, o_ref, *, cg, eps):
    """GroupNorm on a lane/sublane-dense (channel_tile, H*W) block.

    Per-channel sums are folded to per-group sums (and broadcast back to
    channels) with a tiny (TC, TC) group-membership matmul, so the big data
    block never carries the 8/cg sublane padding of a (cg, H*W) layout."""
    x = x_ref[...].astype(jnp.float32)                       # (TC, HW)
    tc, hw = x.shape
    cs = jnp.sum(x, axis=-1, keepdims=True)                  # (TC, 1)
    cq = jnp.sum(x * x, axis=-1, keepdims=True)              # (TC, 1)
    if tc == cg:                                             # a single group in this block
        gs = jnp.sum(cs, axis=0, keepdims=True)              # (1, 1)
        gq = jnp.sum(cq, axis=0, keepdims=True)
    else:
        # membership[i, j] = 1 iff channels i, j belong to the same group of cg.
        # Group ids via float floor((i + 0.5)/cg): avoids vector integer
        # division and is exact at these magnitudes.
        ri = lax.broadcasted_iota(jnp.float32, (tc, tc), 0)
        ci = lax.broadcasted_iota(jnp.float32, (tc, tc), 1)
        gi = jnp.floor((ri + 0.5) * (1.0 / cg))
        gj = jnp.floor((ci + 0.5) * (1.0 / cg))
        m = (gi == gj).astype(jnp.float32)                   # (TC, TC)
        gs = jnp.dot(m, cs, preferred_element_type=jnp.float32)   # (TC, 1)
        gq = jnp.dot(m, cq, preferred_element_type=jnp.float32)
    inv = 1.0 / (cg * hw)
    mean = gs * inv
    var = jnp.maximum(gq * inv - mean * mean, 0.0)
    w = w_ref[...]                                           # (TC, 1) f32
    b = b_ref[...]
    scale = lax.rsqrt(var + eps) * w
    shift = b - mean * scale
    o_ref[...] = (x * scale + shift).astype(o_ref.dtype)


def _pixelnorm_kernel(x_ref, o_ref, *, eps):
    """F.normalize(x, p=2, dim=1): one rsqrt per spatial column, one mul/elem."""
    x = x_ref[...].astype(jnp.float32)                       # (C, THW)
    ss = jnp.sum(x * x, axis=0, keepdims=True)               # (1, THW)
    inv = lax.rsqrt(jnp.maximum(ss, eps * eps))              # == 1/max(||x||, eps)
    o_ref[...] = (x * inv).astype(o_ref.dtype)


# --------------------------------------------------------------------------- two-pass (huge-reduction) kernels

def _row_stats_kernel(x_ref, sum_ref, sq_ref, *, total_cols):
    """Accumulate per-row sum / sum-of-squares across lane tiles ("arbitrary" axis)."""
    j = pl.program_id(1)

    @pl.when(j == 0)
    def _():
        sum_ref[...] = jnp.zeros_like(sum_ref)
        sq_ref[...] = jnp.zeros_like(sq_ref)

    x = x_ref[...].astype(jnp.float32)                       # (TR, TCOL)
    tcol = x.shape[-1]
    if total_cols % tcol != 0:                               # mask the padded tail tile
        col = j * tcol + lax.broadcasted_iota(jnp.int32, x.shape, 1)
        x = jnp.where(col < total_cols, x, 0.0)
    sum_ref[...] += jnp.sum(x, axis=-1, keepdims=True)
    sq_ref[...] += jnp.sum(x * x, axis=-1, keepdims=True)


def _row_affine_kernel(x_ref, scale_ref, shift_ref, o_ref):
    x = x_ref[...].astype(jnp.float32)
    o_ref[...] = (x * scale_ref[...] + shift_ref[...]).astype(o_ref.dtype)


def _ln_apply_kernel(x_ref, a_ref, c_ref, w_ref, b_ref, o_ref):
    x = x_ref[...].astype(jnp.float32)
    xn = x * a_ref[...] + c_ref[...]                         # per-row scale/shift
    o_ref[...] = (xn * w_ref[...] + b_ref[...]).astype(o_ref.dtype)   # per-column affine


def _row_stats(x2, target_bytes):
    r, l = x2.shape
    tr, tcol = _pick_fallback_tiles(r, l, target_bytes)
    grid = (pl.cdiv(r, tr), pl.cdiv(l, tcol))
    return pl.pallas_call(
        functools.partial(_row_stats_kernel, total_cols=l),
        out_shape=(jax.ShapeDtypeStruct((r, 1), jnp.float32),
                   jax.ShapeDtypeStruct((r, 1), jnp.float32)),
        grid=grid,
        in_specs=[pl.BlockSpec((tr, tcol), lambda i, j: (i, j))],
        out_specs=(pl.BlockSpec((tr, 1), lambda i, j: (i, 0)),
                   pl.BlockSpec((tr, 1), lambda i, j: (i, 0))),
        compiler_params=_cparams("parallel", "arbitrary"),
        cost_estimate=pl.CostEstimate(flops=3 * x2.size, transcendentals=0,
                                      bytes_accessed=x2.size * x2.dtype.itemsize + 8 * r),
    )(x2)


def _row_affine_apply(x2, scale, shift, target_bytes):
    r, l = x2.shape
    tr, tcol = _pick_fallback_tiles(r, l, target_bytes)
    grid = (pl.cdiv(r, tr), pl.cdiv(l, tcol))
    return pl.pallas_call(
        _row_affine_kernel,
        out_shape=jax.ShapeDtypeStruct((r, l), x2.dtype),
        grid=grid,
        in_specs=[pl.BlockSpec((tr, tcol), lambda i, j: (i, j)),
                  pl.BlockSpec((tr, 1), lambda i, j: (i, 0)),
                  pl.BlockSpec((tr, 1), lambda i, j: (i, 0))],
        out_specs=pl.BlockSpec((tr, tcol), lambda i, j: (i, j)),
        compiler_params=_cparams("parallel", "parallel"),
        cost_estimate=_cost(x2.size, x2.dtype.itemsize, flops_per_elem=2),
    )(x2, scale, shift)


def _ln_apply(x2, a, c, w2, b2, target_bytes):
    r, l = x2.shape
    tr, tcol = _pick_fallback_tiles(r, l, target_bytes)
    grid = (pl.cdiv(r, tr), pl.cdiv(l, tcol))
    return pl.pallas_call(
        _ln_apply_kernel,
        out_shape=jax.ShapeDtypeStruct((r, l), x2.dtype),
        grid=grid,
        in_specs=[pl.BlockSpec((tr, tcol), lambda i, j: (i, j)),
                  pl.BlockSpec((tr, 1), lambda i, j: (i, 0)),
                  pl.BlockSpec((tr, 1), lambda i, j: (i, 0)),
                  pl.BlockSpec((1, tcol), lambda i, j: (0, j)),
                  pl.BlockSpec((1, tcol), lambda i, j: (0, j))],
        out_specs=pl.BlockSpec((tr, tcol), lambda i, j: (i, j)),
        compiler_params=_cparams("parallel", "parallel"),
        cost_estimate=_cost(x2.size, x2.dtype.itemsize, flops_per_elem=4),
    )(x2, a, c, w2, b2)


# --------------------------------------------------------------------------- norm wrappers

def _instance_norm(x, eps=_EPS):
    n, c, h, w = x.shape
    r, l = n * c, h * w
    x2 = x.reshape(r, l)
    target = _target_block_bytes()
    if _FORCE_TWO_PASS or min(r, 8) * l * 4 > _HARD_CAP_BYTES:
        s, q = _row_stats(x2, target)
        mean = s / l
        var = jnp.maximum(q / l - mean * mean, 0.0)
        scale = lax.rsqrt(var + eps)
        return _row_affine_apply(x2, scale, -mean * scale, target).reshape(x.shape)
    tr = _pick_tile(r, l * 4, 8, target)
    out = pl.pallas_call(
        functools.partial(_rownorm_kernel, eps=eps),
        out_shape=jax.ShapeDtypeStruct(x2.shape, x2.dtype),
        grid=(pl.cdiv(r, tr),),
        in_specs=[pl.BlockSpec((tr, l), lambda i: (i, 0))],
        out_specs=pl.BlockSpec((tr, l), lambda i: (i, 0)),
        compiler_params=_cparams("parallel"),
        cost_estimate=_cost(x.size, x.dtype.itemsize, 6, r),
    )(x2)
    return out.reshape(x.shape)


def _layer_norm(x, weight, bias, normalize_shape, eps=_EPS):
    k = len(normalize_shape)
    assert tuple(x.shape[-k:]) == tuple(normalize_shape), (
        f"LayerNorm normalize_shape {normalize_shape} does not match input {x.shape}")
    l = math.prod(normalize_shape)
    r = math.prod(x.shape[:-k]) if x.ndim > k else 1
    x2 = x.reshape(r, l)
    w2 = weight.reshape(1, l).astype(jnp.float32)
    b2 = bias.reshape(1, l).astype(jnp.float32)
    target = _target_block_bytes()
    if _FORCE_TWO_PASS or min(r, 8) * l * 4 > _HARD_CAP_BYTES:
        s, q = _row_stats(x2, target)
        mean = s / l
        var = jnp.maximum(q / l - mean * mean, 0.0)
        rstd = lax.rsqrt(var + eps)
        return _ln_apply(x2, rstd, -mean * rstd, w2, b2, target).reshape(x.shape)
    tr = _pick_tile(r, l * 4, 8, target)
    out = pl.pallas_call(
        functools.partial(_layernorm_kernel, eps=eps),
        out_shape=jax.ShapeDtypeStruct(x2.shape, x2.dtype),
        grid=(pl.cdiv(r, tr),),
        in_specs=[pl.BlockSpec((tr, l), lambda i: (i, 0)),
                  pl.BlockSpec((1, l), lambda i: (0, 0)),
                  pl.BlockSpec((1, l), lambda i: (0, 0))],
        out_specs=pl.BlockSpec((tr, l), lambda i: (i, 0)),
        compiler_params=_cparams("parallel"),
        cost_estimate=_cost(x.size, x.dtype.itemsize, 8, r),
    )(x2, w2, b2)
    return out.reshape(x.shape)


def _batch_norm(x, weight, bias, eps=_EPS):
    n, c, h, w = x.shape
    hw = h * w
    wf = weight.astype(jnp.float32)
    bf = bias.astype(jnp.float32)
    target = _target_block_bytes()
    if _FORCE_TWO_PASS or min(c, 8) * n * hw * 4 > _HARD_CAP_BYTES:
        x2 = x.reshape(n * c, hw)
        s, q = _row_stats(x2, target)
        cnt = n * hw
        mean = jnp.sum(s.reshape(n, c), axis=0) / cnt                          # (C,)
        var = jnp.maximum(jnp.sum(q.reshape(n, c), axis=0) / cnt - mean * mean, 0.0)
        scale_c = lax.rsqrt(var + eps) * wf
        shift_c = bf - mean * scale_c
        scale = jnp.broadcast_to(scale_c[None, :], (n, c)).reshape(n * c, 1)
        shift = jnp.broadcast_to(shift_c[None, :], (n, c)).reshape(n * c, 1)
        return _row_affine_apply(x2, scale, shift, target).reshape(x.shape)
    x3 = x.reshape(n, c, hw)
    tc = _pick_tile(c, n * hw * 4, 8, target)
    out = pl.pallas_call(
        functools.partial(_batchnorm_kernel, eps=eps),
        out_shape=jax.ShapeDtypeStruct(x3.shape, x3.dtype),
        grid=(pl.cdiv(c, tc),),
        in_specs=[pl.BlockSpec((n, tc, hw), lambda i: (0, i, 0)),
                  pl.BlockSpec((1, tc, 1), lambda i: (0, i, 0)),
                  pl.BlockSpec((1, tc, 1), lambda i: (0, i, 0))],
        out_specs=pl.BlockSpec((n, tc, hw), lambda i: (0, i, 0)),
        compiler_params=_cparams("parallel"),
        cost_estimate=_cost(x.size, x.dtype.itemsize, 7, c),
    )(x3, wf.reshape(1, c, 1), bf.reshape(1, c, 1))
    return out.reshape(x.shape)


def _gn_pick_tc(c, cg, hw, target_bytes, n_batch):
    """Channel tile for GroupNorm: multiple of cg, sublane aligned, sized to the
    block budget, capped to keep the (TC,TC) membership matmul tiny, and split
    so the grid has >=4 blocks when possible."""
    s = (8 // math.gcd(8, cg)) * cg          # minimal aligned channel tile
    if c <= s:
        return c
    t = max(1, int(target_bytes) // (hw * 4))
    t = max(s, (t // s) * s)
    cap = (256 // s) * s if s <= 256 else s
    t = min(t, max(cap, s), c)
    t = max(s, (t // s) * s)
    while t > s and n_batch * _cdiv(c, t) < 4:
        t2 = ((t // 2) // s) * s
        if t2 < s:
            break
        t = t2
    return t


def _group_norm(x, weight, bias, num_groups, eps=_EPS):
    n, c, h, w = x.shape
    g = num_groups
    cg = c // g
    hw = h * w
    wf = weight.astype(jnp.float32)
    bf = bias.astype(jnp.float32)
    target = _target_block_bytes()
    s_min = min(c, (8 // math.gcd(8, cg)) * cg)
    if _FORCE_TWO_PASS or s_min * hw * 4 > _HARD_CAP_BYTES:
        x2 = x.reshape(n * c, hw)
        s, q = _row_stats(x2, target)
        cnt = cg * hw
        mean = jnp.sum(s.reshape(n, g, cg), axis=2) / cnt                       # (N, G)
        var = jnp.maximum(jnp.sum(q.reshape(n, g, cg), axis=2) / cnt - mean * mean, 0.0)
        rstd = lax.rsqrt(var + eps)
        scale = rstd[:, :, None] * wf.reshape(1, g, cg)                          # (N, G, cg)
        shift = bf.reshape(1, g, cg) - mean[:, :, None] * scale
        return _row_affine_apply(x2, scale.reshape(n * c, 1),
                                 shift.reshape(n * c, 1), target).reshape(x.shape)
    x3 = x.reshape(n, c, hw)
    tc = _gn_pick_tc(c, cg, hw, target, n)
    out = pl.pallas_call(
        functools.partial(_groupnorm_kernel, cg=cg, eps=eps),
        out_shape=jax.ShapeDtypeStruct(x3.shape, x3.dtype),
        grid=(n, pl.cdiv(c, tc)),
        in_specs=[pl.BlockSpec((None, tc, hw), lambda i, j: (i, j, 0)),
                  pl.BlockSpec((tc, 1), lambda i, j: (j, 0)),
                  pl.BlockSpec((tc, 1), lambda i, j: (j, 0))],
        out_specs=pl.BlockSpec((None, tc, hw), lambda i, j: (i, j, 0)),
        compiler_params=_cparams("parallel", "parallel"),
        cost_estimate=_cost(x.size, x.dtype.itemsize, 7, n * g),
    )(x3, wf.reshape(c, 1), bf.reshape(c, 1))
    return out.reshape(x.shape)


def _pixel_norm(x, eps=_PIXEL_EPS):
    n, c, h, w = x.shape
    hw = h * w
    x3 = x.reshape(n, c, hw)
    target = _target_block_bytes()
    thw = _pick_tile(hw, c * 4, 128, target, min_blocks=max(1, _cdiv(4, n)))
    out = pl.pallas_call(
        functools.partial(_pixelnorm_kernel, eps=eps),
        out_shape=jax.ShapeDtypeStruct(x3.shape, x3.dtype),
        grid=(n, pl.cdiv(hw, thw)),
        in_specs=[pl.BlockSpec((None, c, thw), lambda i, j: (i, 0, j))],
        out_specs=pl.BlockSpec((None, c, thw), lambda i, j: (i, 0, j)),
        compiler_params=_cparams("parallel", "parallel"),
        cost_estimate=_cost(x.size, x.dtype.itemsize, 3, n * hw),
    )(x3)
    return out.reshape(x.shape)


# --------------------------------------------------------------------------- module

class NormLayer:
    """JAX/Pallas port of GPEN NormLayer ('bn','in','gn','pixel','layer','none')."""

    def __init__(self, channels, normalize_shape=None, norm_type='bn', ref_channels=None):
        norm_type = norm_type.lower()
        self.norm_type = norm_type
        self.channels = channels
        if norm_type == 'bn':
            self.weight = jnp.ones((channels,), jnp.float32)
            self.bias = jnp.zeros((channels,), jnp.float32)
        elif norm_type == 'in':
            pass  # InstanceNorm2d(affine=False): no parameters
        elif norm_type == 'gn':
            assert channels % 32 == 0, "GroupNorm(32, channels) requires channels % 32 == 0"
            self.num_groups = 32
            self.weight = jnp.ones((channels,), jnp.float32)
            self.bias = jnp.zeros((channels,), jnp.float32)
        elif norm_type == 'pixel':
            pass
        elif norm_type == 'layer':
            assert normalize_shape is not None, "layer norm needs normalize_shape"
            if isinstance(normalize_shape, int):
                normalize_shape = (normalize_shape,)
            self.normalize_shape = tuple(normalize_shape)
            self.weight = jnp.ones(self.normalize_shape, jnp.float32)
            self.bias = jnp.zeros(self.normalize_shape, jnp.float32)
        elif norm_type == 'none':
            pass
        else:
            raise AssertionError(f'Norm type {norm_type} not support.')

    def __call__(self, x, ref=None):
        nt = self.norm_type
        if nt == 'none':
            return x  # identity: skip the kernel launch / HBM round trip entirely
        if nt == 'bn':
            return _batch_norm(x, self.weight, self.bias)
        if nt == 'in':
            return _instance_norm(x)
        if nt == 'gn':
            return _group_norm(x, self.weight, self.bias, self.num_groups)
        if nt == 'pixel':
            return _pixel_norm(x)
        if nt == 'layer':
            return _layer_norm(x, self.weight, self.bias, self.normalize_shape)
        raise AssertionError(f'Norm type {nt} not support.')


# --------------------------------------------------------------------------- reference

def _reference(x, layer):
    nt = layer.norm_type
    if nt == 'bn':
        mean = x.mean(axis=(0, 2, 3), keepdims=True)
        var = ((x - mean) ** 2).mean(axis=(0, 2, 3), keepdims=True)
        xn = (x - mean) / jnp.sqrt(var + _EPS)
        return xn * layer.weight.reshape(1, -1, 1, 1) + layer.bias.reshape(1, -1, 1, 1)
    if nt == 'in':
        mean = x.mean(axis=(2, 3), keepdims=True)
        var = ((x - mean) ** 2).mean(axis=(2, 3), keepdims=True)
        return (x - mean) / jnp.sqrt(var + _EPS)
    if nt == 'gn':
        n, c, h, w = x.shape
        g = layer.num_groups
        xg = x.reshape(n, g, c // g, h, w)
        mean = xg.mean(axis=(2, 3, 4), keepdims=True)
        var = ((xg - mean) ** 2).mean(axis=(2, 3, 4), keepdims=True)
        xn = ((xg - mean) / jnp.sqrt(var + _EPS)).reshape(n, c, h, w)
        return xn * layer.weight.reshape(1, -1, 1, 1) + layer.bias.reshape(1, -1, 1, 1)
    if nt == 'pixel':
        nrm = jnp.sqrt(jnp.sum(x * x, axis=1, keepdims=True))
        return x / jnp.maximum(nrm, _PIXEL_EPS)
    if nt == 'layer':
        k = len(layer.normalize_shape)
        axes = tuple(range(x.ndim - k, x.ndim))
        mean = x.mean(axis=axes, keepdims=True)
        var = ((x - mean) ** 2).mean(axis=axes, keepdims=True)
        xn = (x - mean) / jnp.sqrt(var + _EPS)
        return xn * layer.weight + layer.bias
    return x


if __name__ == "__main__":
    key = jax.random.PRNGKey(0)
    # C=64 so GroupNorm(32, C) is valid; H*W=256 keeps the lane axis 128-aligned.
    N, C, H, W = 2, 64, 16, 16
    x = jax.random.normal(key, (N, C, H, W), dtype=jnp.float32)

    ok = True

    def _check(tag):
        global ok
        for norm_type in ("bn", "in", "gn", "pixel", "layer", "none"):
            layer = NormLayer(C, normalize_shape=(H, W), norm_type=norm_type)
            y = jax.block_until_ready(layer(x))
            ref = _reference(x, layer)
            if y.shape != x.shape or not jnp.allclose(y, ref, atol=1e-4, rtol=1e-4):
                ok = False
                err = float(jnp.max(jnp.abs(y - ref)))
                print(f"MISMATCH [{tag}] norm_type={norm_type}: max_abs_err={err}")

    _check("single-pass")

    # Also exercise the two-pass (huge-reduction) fallback kernels at small shapes.
    _FORCE_TWO_PASS = True
    _check("two-pass")
    _FORCE_TWO_PASS = False

    if ok:
        print("KERNEL_OK")
</pallas_src>

<mosaic_0001>
module attributes {stable_mosaic.version = 11 : i64} {
  func.func @_batchnorm_kernel(%arg0: i32, %arg1: memref<2x16x256xf32, #tpu.memory_space<vmem>>, %arg2: memref<1x16x1xf32, #tpu.memory_space<vmem>>, %arg3: memref<1x16x1xf32, #tpu.memory_space<vmem>>, %arg4: memref<2x16x256xf32, #tpu.memory_space<vmem>>) attributes {dimension_semantics = [#tpu.dimension_semantics<parallel>], iteration_bounds = array<i64: 4>, scalar_prefetch = 0 : i64, scratch_operands = 0 : i64, tpu.core_type = #tpu.core_type<tc>, window_params = [{transform_indices = @transform_0, window_bounds = array<i64: 2, 16, 256>}, {transform_indices = @transform_1, window_bounds = array<i64: 1, 16, 1>}, {transform_indices = @transform_2, window_bounds = array<i64: 1, 16, 1>}, {transform_indices = @transform_3, window_bounds = array<i64: 2, 16, 256>}]} {
    %c0 = arith.constant 0 : index
    %c0_0 = arith.constant 0 : index
    %c0_1 = arith.constant 0 : index
    %0 = vector.load %arg1[%c0, %c0_0, %c0_1] : memref<2x16x256xf32, #tpu.memory_space<vmem>>, vector<2x16x256xf32>
    %cst = arith.constant dense<0.000000e+00> : vector<2x16xf32>
    %1 = vector.multi_reduction <add>, %0, %cst [2] : vector<2x16x256xf32> to vector<2x16xf32>
    %2 = vector.shape_cast %1 : vector<2x16xf32> to vector<2x16x1xf32>
    %cst_2 = arith.constant dense<0.000000e+00> : vector<16x1xf32>
    %3 = vector.multi_reduction <add>, %2, %cst_2 [0] : vector<2x16x1xf32> to vector<16x1xf32>
    %4 = vector.shape_cast %3 : vector<16x1xf32> to vector<1x16x1xf32>
    %5 = arith.mulf %0, %0 : vector<2x16x256xf32>
    %cst_3 = arith.constant dense<0.000000e+00> : vector<2x16xf32>
    %6 = vector.multi_reduction <add>, %5, %cst_3 [2] : vector<2x16x256xf32> to vector<2x16xf32>
    %7 = vector.shape_cast %6 : vector<2x16xf32> to vector<2x16x1xf32>
    %cst_4 = arith.constant dense<0.000000e+00> : vector<16x1xf32>
    %8 = vector.multi_reduction <add>, %7, %cst_4 [0] : vector<2x16x1xf32> to vector<16x1xf32>
    %9 = vector.shape_cast %8 : vector<16x1xf32> to vector<1x16x1xf32>
    %cst_5 = arith.constant 0.001953125 : f32
    %10 = vector.broadcast %cst_5 : f32 to vector<1x16x1xf32>
    %11 = arith.mulf %4, %10 : vector<1x16x1xf32>
    %cst_6 = arith.constant 0.001953125 : f32
    %12 = vector.broadcast %cst_6 : f32 to vector<1x16x1xf32>
    %13 = arith.mulf %9, %12 : vector<1x16x1xf32>
    %14 = arith.mulf %11, %11 : vector<1x16x1xf32>
    %15 = arith.subf %13, %14 : vector<1x16x1xf32>
    %cst_7 = arith.constant 0.000000e+00 : f32
    %16 = vector.broadcast %cst_7 : f32 to vector<1x16x1xf32>
    %17 = arith.maximumf %15, %16 : vector<1x16x1xf32>
    %c0_8 = arith.constant 0 : index
    %c0_9 = arith.constant 0 : index
    %c0_10 = arith.constant 0 : index
    %18 = vector.load %arg2[%c0_8, %c0_9, %c0_10] : memref<1x16x1xf32, #tpu.memory_space<vmem>>, vector<1x16x1xf32>
    %c0_11 = arith.constant 0 : index
    %c0_12 = arith.constant 0 : index
    %c0_13 = arith.constant 0 : index
    %19 = vector.load %arg3[%c0_11, %c0_12, %c0_13] : memref<1x16x1xf32, #tpu.memory_space<vmem>>, vector<1x16x1xf32>
    %cst_14 = arith.constant 9.99999974E-6 : f32
    %20 = vector.broadcast %cst_14 : f32 to vector<1x16x1xf32>
    %21 = arith.addf %17, %20 : vector<1x16x1xf32>
    %22 = math.rsqrt %21 : vector<1x16x1xf32>
    %23 = arith.mulf %22, %18 : vector<1x16x1xf32>
    %24 = arith.mulf %11, %23 : vector<1x16x1xf32>
    %25 = arith.subf %19, %24 : vector<1x16x1xf32>
    %26 = vector.broadcast %23 : vector<1x16x1xf32> to vector<2x16x256xf32>
    %27 = arith.mulf %0, %26 : vector<2x16x256xf32>
    %28 = vector.broadcast %25 : vector<1x16x1xf32> to vector<2x16x256xf32>
    %29 = arith.addf %27, %28 : vector<2x16x256xf32>
    %c0_15 = arith.constant 0 : index
    %c0_16 = arith.constant 0 : index
    %c0_17 = arith.constant 0 : index
    %30 = vector.load %arg4[%c0_15, %c0_16, %c0_17] : memref<2x16x256xf32, #tpu.memory_space<vmem>>, vector<2x16x256xf32>
    tpu.vector_store %arg4[%c0_15, %c0_16, %c0_17], %29 {strides = array<i32>} : memref<2x16x256xf32, #tpu.memory_space<vmem>>, vector<2x16x256xf32>,
    return
  }
  func.func @transform_0(%arg0: i32) -> (i32, i32, i32) {
    %c0_i32 = arith.constant 0 : i32
    %c0_i32_0 = arith.constant 0 : i32
    %c0_i32_1 = arith.constant 0 : i32
    return %c0_i32, %arg0, %c0_i32_0 : i32, i32, i32
  }
  func.func @transform_1(%arg0: i32) -> (i32, i32, i32) {
    %c0_i32 = arith.constant 0 : i32
    %c0_i32_0 = arith.constant 0 : i32
    %c0_i32_1 = arith.constant 0 : i32
    return %c0_i32, %arg0, %c0_i32_0 : i32, i32, i32
  }
  func.func @transform_2(%arg0: i32) -> (i32, i32, i32) {
    %c0_i32 = arith.constant 0 : i32
    %c0_i32_0 = arith.constant 0 : i32
    %c0_i32_1 = arith.constant 0 : i32
    return %c0_i32, %arg0, %c0_i32_0 : i32, i32, i32
  }
  func.func @transform_3(%arg0: i32) -> (i32, i32, i32) {
    %c0_i32 = arith.constant 0 : i32
    %c0_i32_0 = arith.constant 0 : i32
    %c0_i32_1 = arith.constant 0 : i32
    return %c0_i32, %arg0, %c0_i32_0 : i32, i32, i32
  }
}

</mosaic_0001>

<llo_original>
// kernel: tpu_custom_call.1
$region0: #{tpu_custom_call.1}
  #allocation0 [shape = 'u32[]', space=smem, size = 0x4, offset = 0x4, fixed_abs, tag = 'smem constant byte address 0x4 - core index']
  #allocation1 [shape = 'u32[144,128]{1,0:T(1,128)}', space=vmem, size = 0x12000, scoped, tag = 'internal scratch']
  #allocation6 [shape = 's32[]', space=sflag, size = 0x4, offset = 0, fixed_abs, tag = 'sflag constant byte address 0x0 - dummy sync flag']
  #allocation8 [shape = 's32[]', space=sflag, size = 0x4, offset = 0, fixed_abs, tag = 'sflag constant byte address 0x0 - dummy sync flag']
  %s0 = inlined_call_operand.hbm [shape: f32[2,64,256], index: 0, kind: input, shape index: {}]
  %s1 = inlined_call_operand.vmem [shape: f32[1,64,1], index: 1, kind: input, shape index: {}]
  %s2 = inlined_call_operand.vmem [shape: f32[1,64,1], index: 2, kind: input, shape index: {}]
  %s3 = inlined_call_operand.hbm [shape: f32[2,64,256], index: 3, kind: output, shape index: {}]
  %s4 = sld [smem:[#allocation0]]
  $region49: #{tpu_custom_call.1} parent=0
    _
  %s6 = ssub.s32 1, %s4
  %s7 = scalar_select 0, %s6, %s4
  $region1: #{tpu_custom_call.1} parent=0
    #allocation2 [shape = 'u8[65536]{0}', space=vmem, size = 0x10000, scoped, tag = 'input window, operand 0']
    #allocation3 [shape = 's32[2]{0}', space=sflag, size = 0x8, scoped, tag = 'scoped memory for tpu_custom_call.1']
    #allocation4 [shape = 's32[2]{0}', space=sflag, size = 0x8, scoped, tag = 'scoped memory for tpu_custom_call.1']
    #allocation5 [shape = 'u8[65536]{0}', space=vmem, size = 0x10000, scoped, tag = 'output window, operand 0']
    %8 = vsyncpa [#allocation3], 0
    %s9 = scalar_lea.sflag [#allocation3], 1
    %10 = vsyncpa %s9, 0
    %11 = vsyncpa [#allocation4], 0
    %s12 = scalar_lea.sflag [#allocation4], 1
    %13 = vsyncpa %s12, 0
    loop: start=0, step=1, limit=6
    $region2: #{tpu_custom_call.1} parent=1 // loop_pre_header
      _
    $region3: #{tpu_custom_call.1} parent=1 // loop_header
      %s15 = sphi 0, %s19
      %p16 = scmp.ge.s32.totalorder %s15, 6
      %s25 = sphi 0, %s27
      %s28 = sphi 0, %s25
      %s29 = sphi 0, %s28
      %s45 = sphi 0, %s29
      %s51 = sphi 0, %s53
      %s54 = sphi 0, %s51
      %s55 = sphi 0, %s54
      %s71 = sphi 0, %s55
      %s77 = sphi 0, %s79
      %s80 = sphi 0, %s77
      %s81 = sphi 0, %s80
      %s97 = sphi 0, %s81
      %s103 = sphi 0, %s105
      %s106 = sphi 0, %s103
      %s107 = sphi 0, %s106
      %s123 = sphi 0, %s107
    $region4: #{tpu_custom_call.1} parent=1 // loop_header_branch
      %18 = sbr.rel (%p16) target = $region8
    $region5: #{tpu_custom_call.1} parent=1 // loop_body
      %s20 = ssub.s32 %s15, 1
      %s21 = ssub.s32 %s15, 2
      %s22 = sadd.s32 %s15, 1
      %s23 = ssub.s32 %s15, %s22
      %p24 = scmp.eq.s32.totalorder %s23, 0
      %s26 = sadd.s32 %s25, 1
      %s27 = scalar_select %p24, %s25, %s26
      %p30 = pneg %p24
      %p31 = scmp.eq.s32.totalorder %s15, 3
      %p32 = por %p30, %p31
      %p33 = scmp.ne.s32.totalorder %s25, %s28
      %p34 = scmp.eq.s32.totalorder %s15, 0
      %p35 = por %p33, %p34
      %p36 = scmp.ne.s32.totalorder %s25, %s28
      %p37 = scmp.eq.s32.totalorder %s20, 3
      %p38 = por %p36, %p37
      %p39 = scmp.ne.s32.totalorder %s28, %s29
      %p40 = scmp.eq.s32.totalorder %s20, 0
      %p41 = por %p39, %p40
      %p42 = scmp.ne.s32.totalorder %s28, %s29
      %p43 = scmp.eq.s32.totalorder %s21, 3
      %p44 = por %p42, %p43
      %p46 = scmp.ne.s32.totalorder %s29, %s45
      %p47 = scmp.eq.s32.totalorder %s21, 0
      %p48 = por %p46, %p47
      %s49 = ssub.s32 %s15, %s22
      %p50 = scmp.eq.s32.totalorder %s49, 0
      %s52 = sadd.s32 %s51, 1
      %s53 = scalar_select %p50, %s51, %s52
      %p56 = pneg %p50
      %p57 = scmp.eq.s32.totalorder %s15, 3
      %p58 = por %p56, %p57
      %p59 = scmp.ne.s32.totalorder %s51, %s54
      %p60 = scmp.eq.s32.totalorder %s15, 0
      %p61 = por %p59, %p60
      %p62 = scmp.ne.s32.totalorder %s51, %s54
      %p63 = scmp.eq.s32.totalorder %s20, 3
      %p64 = por %p62, %p63
      %p65 = scmp.ne.s32.totalorder %s54, %s55
      %p66 = scmp.eq.s32.totalorder %s20, 0
      %p67 = por %p65, %p66
      %p68 = scmp.ne.s32.totalorder %s54, %s55
      %p69 = scmp.eq.s32.totalorder %s21, 3
      %p70 = por %p68, %p69
      %p72 = scmp.ne.s32.totalorder %s55, %s71
      %p73 = scmp.eq.s32.totalorder %s21, 0
      %p74 = por %p72, %p73
      %s75 = ssub.s32 %s15, %s22
      %p76 = scmp.eq.s32.totalorder %s75, 0
      %s78 = sadd.s32 %s77, 1
      %s79 = scalar_select %p76, %s77, %s78
      %p82 = pneg %p76
      %p83 = scmp.eq.s32.totalorder %s15, 3
      %p84 = por %p82, %p83
      %p85 = scmp.ne.s32.totalorder %s77, %s80
      %p86 = scmp.eq.s32.totalorder %s15, 0
      %p87 = por %p85, %p86
      %p88 = scmp.ne.s32.totalorder %s77, %s80
      %p89 = scmp.eq.s32.totalorder %s20, 3
      %p90 = por %p88, %p89
      %p91 = scmp.ne.s32.totalorder %s80, %s81
      %p92 = scmp.eq.s32.totalorder %s20, 0
      %p93 = por %p91, %p92
      %p94 = scmp.ne.s32.totalorder %s80, %s81
      %p95 = scmp.eq.s32.totalorder %s21, 3
      %p96 = por %p94, %p95
      %p98 = scmp.ne.s32.totalorder %s81, %s97
      %p99 = scmp.eq.s32.totalorder %s21, 0
      %p100 = por %p98, %p99
      %s101 = ssub.s32 %s15, %s22
      %p102 = scmp.eq.s32.totalorder %s101, 0
      %s104 = sadd.s32 %s103, 1
      %s105 = scalar_select %p102, %s103, %s104
      %p108 = pneg %p102
      %p109 = scmp.eq.s32.totalorder %s15, 3
      %p110 = por %p108, %p109
      %p111 = scmp.ne.s32.totalorder %s103, %s106
      %p112 = scmp.eq.s32.totalorder %s15, 0
      %p113 = por %p111, %p112
      %p114 = scmp.ne.s32.totalorder %s103, %s106
      %p115 = scmp.eq.s32.totalorder %s20, 3
      %p116 = por %p114, %p115
      %p117 = scmp.ne.s32.totalorder %s106, %s107
      %p118 = scmp.eq.s32.totalorder %s20, 0
      %p119 = por %p117, %p118
      %p120 = scmp.ne.s32.totalorder %s106, %s107
      %p121 = scmp.eq.s32.totalorder %s21, 3
      %p122 = por %p120, %p121
      %p124 = scmp.ne.s32.totalorder %s107, %s123
      %p125 = scmp.eq.s32.totalorder %s21, 0
      %p126 = por %p124, %p125
      %p127 = scmp.le.s32.totalorder 1, %s15
      %p128 = scmp.lt.s32.totalorder %s15, 5
      %p129 = pnand %p127, %p128
      %p130 = pneg %p129
      // Predicated region
      $region9: #{tpu_custom_call.1} parent=5 // pred_check
        _
      $region10: #{tpu_custom_call.1} parent=5 // pred_check_branch
        %132 = sbr.rel (%p129) target = $region12
      $region11: #{tpu_custom_call.1} parent=5 // pred_region
        %s133 = ssub.s32 %s15, 1
      $region12: #{tpu_custom_call.1} parent=5 // pred_fallthru
        _
      %p134 = scmp.lt.s32.totalorder %s15, 4
      // Predicated region
      $region13: #{tpu_custom_call.1} parent=5 // pred_check
        %p135 = pneg %p134
      $region14: #{tpu_custom_call.1} parent=5 // pred_check_branch
        %137 = sbr.rel (%p135) target = $region16
      $region15: #{tpu_custom_call.1} parent=5 // pred_region
        // Predicated region
        $region17: #{tpu_custom_call.1} parent=15 // pred_check
          %p138 = pneg %p35
        $region18: #{tpu_custom_call.1} parent=15 // pred_check_branch
          %140 = sbr.rel (%p138) target = $region20
        $region19: #{tpu_custom_call.1} parent=15 // pred_region
          #allocation7 [shape = 'u32[6]{0}', space=smem, size = 0x18, scoped, tag = 'DMA stride descriptor']
          %s141 = sand.u32 %s25, 1
          %s142 = scalar_lea.sflag [#allocation3], %s141
          %s143 = sand.u32 %s25, 1
          %s144 = smul.addr %s143, 64
          %s145 = scalar_lea.vmem [#allocation2], %s144
          %s146 = smul.u32 2, %s15
          %s148 = ssub.s32 1024, 1024
          %149 = vsyncadd %s142, %s148
          %s150 = smul.addr %s146, 2
          %s151 = smul.addr %s150, 128
          %s152 = scalar_lea.hbm %s0, %s151
          %s154 = sshll.u32 1, 14
          %s155 = sxor.u32 4294967295, %s154
          %s157 = sld [smem:[#allocation0]]
          %s158 = sadd.s32 2, %s157
          %s160 = sshll.u32 7, 26
          %s161 = sxor.u32 4294967295, %s160
          %s162 = sand.u32 0, %s161
          %s163 = sshll.u32 %s158, 26
          %s164 = sor.u32 %s162, %s163
          %s165 = sshll.u32 %s145, 4
          %s166 = int_to_ptr.vmem [resolvable:$true] %s165
          %172 = sst [smem:[#allocation7]] 2048
          %s173 = scalar_lea.smem [#allocation7], 1
          %174 = sst [smem:[%s173]] 512
          %s175 = scalar_lea.smem [#allocation7], 2
          %176 = sst [smem:[%s175]] 2
          %s177 = scalar_lea.smem [#allocation7], 3
          %178 = sst [smem:[%s177]] 256
          %s179 = scalar_lea.smem [#allocation7], 4
          %180 = sst [smem:[%s179]] 256
          %s181 = scalar_lea.smem [#allocation7], 5
          %182 = sst [smem:[%s181]] 16
          %184 = dma.general %s152, 1024, %s166, %s142, 131072, [#allocation7], %s164, 0
        $region20: #{tpu_custom_call.1} parent=15 // pred_fallthru
          _
        // Predicated region
        $region21: #{tpu_custom_call.1} parent=15 // pred_check
          %p185 = pneg %p61
        $region22: #{tpu_custom_call.1} parent=15 // pred_check_branch
          %187 = sbr.rel (%p185) target = $region24
        $region23: #{tpu_custom_call.1} parent=15 // pred_region
          %s188 = smul.u32 2, %s15
          %p189 = scmp.lt.s32.totalorder %s188, 7
          %s190 = scalar_select %p189, %s188, 7
          %s191 = smul.addr %s190, 8
          %s192 = scalar_lea.vmem %s1, %s191
          %s193 = smul.u32 2, %s15
        $region24: #{tpu_custom_call.1} parent=15 // pred_fallthru
          _
        // Predicated region
        $region25: #{tpu_custom_call.1} parent=15 // pred_check
          %p194 = pneg %p87
        $region26: #{tpu_custom_call.1} parent=15 // pred_check_branch
          %196 = sbr.rel (%p194) target = $region28
        $region27: #{tpu_custom_call.1} parent=15 // pred_region
          %s197 = smul.u32 2, %s15
          %p198 = scmp.lt.s32.totalorder %s197, 7
          %s199 = scalar_select %p198, %s197, 7
          %s200 = smul.addr %s199, 8
          %s201 = scalar_lea.vmem %s2, %s200
          %s202 = smul.u32 2, %s15
        $region28: #{tpu_custom_call.1} parent=15 // pred_fallthru
          _
      $region16: #{tpu_custom_call.1} parent=5 // pred_fallthru
        _
      %p203 = scmp.le.s32.totalorder 1, %s15
      %p204 = scmp.lt.s32.totalorder %s15, 5
      %p205 = pnand %p203, %p204
      %p206 = pneg %p205
      // Predicated region
      $region29: #{tpu_custom_call.1} parent=5 // pred_check
        _
      $region30: #{tpu_custom_call.1} parent=5 // pred_check_branch
        %208 = sbr.rel (%p205) target = $region32
      $region31: #{tpu_custom_call.1} parent=5 // pred_region
        %s209 = ssub.s32 %s15, 1
        %s210 = sand.u32 %s28, 1
        %s211 = scalar_lea.sflag [#allocation3], %s210
        %s212 = sand.u32 %s28, 1
        %s213 = smul.addr %s212, 64
        %s214 = scalar_lea.vmem [#allocation2], %s213
        // Predicated region
        $region33: #{tpu_custom_call.1} parent=31 // pred_check
          %p215 = pneg %p41
        $region34: #{tpu_custom_call.1} parent=31 // pred_check_branch
          %217 = sbr.rel (%p215) target = $region36
        $region35: #{tpu_custom_call.1} parent=31 // pred_region
          %218 = dma.done %s211, 1024
        $region36: #{tpu_custom_call.1} parent=31 // pred_fallthru
          _
        %s219 = sand.u32 %s28, 1
        %s220 = scalar_lea.sflag [#allocation3], %s219
        %s221 = sand.u32 %s28, 1
        %s222 = smul.addr %s221, 64
        %s223 = scalar_lea.vmem [#allocation2], %s222
        %p224 = pneg %p41
        %p225 = pneg %p38
        %s226 = smul.u32 2, %s20
        %p227 = scmp.lt.s32.totalorder %s226, 7
        %s228 = scalar_select %p227, %s226, 7
        %s229 = smul.addr %s228, 8
        %s230 = scalar_lea.vmem %s1, %s229
        %p231 = pneg %p67
        %p232 = pneg %p64
        %s233 = smul.u32 2, %s20
        %p234 = scmp.lt.s32.totalorder %s233, 7
        %s235 = scalar_select %p234, %s233, 7
        %s236 = smul.addr %s235, 8
        %s237 = scalar_lea.vmem %s2, %s236
        %p238 = pneg %p93
        %p239 = pneg %p90
        %p240 = pneg %p119
        %p241 = pneg %p116
        %s242 = sand.u32 %s106, 1
        %s243 = scalar_lea.sflag [#allocation4], %s242
        %s244 = sand.u32 %s106, 1
        %s245 = smul.addr %s244, 64
        %s246 = scalar_lea.vmem [#allocation5], %s245
        %s247 = smul.u32 2, %s20
        %s248 = smul.u32 2, %s20
        %p249 = scmp.lt.s32.totalorder %s248, 7
        %s250 = scalar_select %p249, %s248, 7
        %s251 = smul.addr %s250, 8
        %s252 = scalar_lea.vmem %s1, %s251
        %s253 = smul.u32 2, %s20
        %s254 = smul.u32 2, %s20
        %p255 = scmp.lt.s32.totalorder %s254, 7
        %s256 = scalar_select %p255, %s254, 7
        %s257 = smul.addr %s256, 8
        %s258 = scalar_lea.vmem %s2, %s257
        %s259 = smul.u32 2, %s20
        %s260 = smul.u32 2, %s20
        %v261 = vld [vmem:[%s214] sm:$0xff]
        %v262 = vld [vmem:[%s214 + $0x8] sm:$0xff]
        %v263 = vld [vmem:[%s214 + $0x10] sm:$0xff]
        %v264 = vld [vmem:[%s214 + $0x18] sm:$0xff]
        %v265 = vld [vmem:[%s214 + $0x20] sm:$0xff]
        %v266 = vld [vmem:[%s214 + $0x28] sm:$0xff]
        %v267 = vld [vmem:[%s214 + $0x30] sm:$0xff]
        %v268 = vld [vmem:[%s214 + $0x38] sm:$0xff]
        %v269 = vadd.f32 %v261, %v262
        %270 = vadd.xlane.f32.xlu0 %v269
        %v271 = vpop.xlane.xlu0 %270
        %v272 = vadd.f32 %v263, %v264
        %273 = vadd.xlane.f32.xlu0 %v272
        %v274 = vpop.xlane.xlu0 %273
        %v275 = vadd.f32 %v265, %v266
        %276 = vadd.xlane.f32.xlu0 %v275
        %v277 = vpop.xlane.xlu0 %276
        %v278 = vadd.f32 %v267, %v268
        %279 = vadd.xlane.f32.xlu0 %v278
        %v280 = vpop.xlane.xlu0 %279
        %v281 = vadd.f32 %v271, %v277
        %v282 = vadd.f32 %v274, %v280
        %v283 = vmul.f32 %v261, %v261
        %v284 = vmul.f32 %v262, %v262
        %v285 = vmul.f32 %v263, %v263
        %v286 = vmul.f32 %v264, %v264
        %v287 = vmul.f32 %v265, %v265
        %v288 = vmul.f32 %v266, %v266
        %v289 = vmul.f32 %v267, %v267
        %v290 = vmul.f32 %v268, %v268
        %v291 = vadd.f32 %v283, %v284
        %292 = vadd.xlane.f32.xlu0 %v291
        %v293 = vpop.xlane.xlu0 %292
        %v294 = vadd.f32 %v285, %v286
        %295 = vadd.xlane.f32.xlu0 %v294
        %v296 = vpop.xlane.xlu0 %295
        %v297 = vadd.f32 %v287, %v288
        %298 = vadd.xlane.f32.xlu0 %v297
        %v299 = vpop.xlane.xlu0 %298
        %v300 = vadd.f32 %v289, %v290
        %301 = vadd.xlane.f32.xlu0 %v300
        %v302 = vpop.xlane.xlu0 %301
        %v303 = vadd.f32 %v293, %v299
        %v304 = vadd.f32 %v296, %v302
        %v305 = vmul.f32 %v281, 0.001953125
        %v306 = vmul.f32 %v282, 0.001953125
        %v307 = vmul.f32 %v303, 0.001953125
        %v308 = vmul.f32 %v304, 0.001953125
        %v309 = vmul.f32 %v305, %v305
        %v310 = vmul.f32 %v306, %v306
        %v311 = vsub.f32 %v307, %v309
        %v312 = vsub.f32 %v308, %v310
        %v313 = vmax.f32 %v311, 0.0
        %v314 = vmax.f32 %v312, 0.0
        %v315 = vld [vmem:[%s252] sm:$0xff]
        %v316 = vld [vmem:[%s252 + $0x8] sm:$0xff]
        %v317 = vld [vmem:[%s258] sm:$0xff]
        %v318 = vld [vmem:[%s258 + $0x8] sm:$0xff]
        %v319 = vadd.f32 %v313, 1e-05
        %v320 = vadd.f32 %v314, 1e-05
        %v321 = vrsqrt.pop %v319
        %v322 = vrsqrt.pop %v320
        %v323 = vmul.f32 %v321, %v315
        %v324 = vmul.f32 %v322, %v316
        %v325 = vmul.f32 %v305, %v323
        %v326 = vmul.f32 %v306, %v324
        %v327 = vsub.f32 %v317, %v325
        %v328 = vsub.f32 %v318, %v326
        %330 = vset.pattern.permute.xlu0 0
        %331 = vperm.xlu0 %330, %v323
        %v332 = vpop.permute.xlu0 %331
        %335 = vset.pattern.permute.xlu0 0
        %336 = vperm.xlu0 %335, %v324
        %v337 = vpop.permute.xlu0 %336
        %v339 = vmul.f32 %v261, %v332
        %v340 = vmul.f32 %v262, %v332
        %v341 = vmul.f32 %v263, %v337
        %v342 = vmul.f32 %v264, %v337
        %v343 = vmul.f32 %v265, %v332
        %v344 = vmul.f32 %v266, %v332
        %v345 = vmul.f32 %v267, %v337
        %v346 = vmul.f32 %v268, %v337
        %348 = vset.pattern.permute.xlu0 0
        %349 = vperm.xlu0 %348, %v327
        %v350 = vpop.permute.xlu0 %349
        %353 = vset.pattern.permute.xlu0 0
        %354 = vperm.xlu0 %353, %v328
        %v355 = vpop.permute.xlu0 %354
        %v357 = vadd.f32 %v339, %v350
        %v358 = vadd.f32 %v340, %v350
        %v359 = vadd.f32 %v341, %v355
        %v360 = vadd.f32 %v342, %v355
        %v361 = vadd.f32 %v343, %v350
        %v362 = vadd.f32 %v344, %v350
        %v363 = vadd.f32 %v345, %v355
        %v364 = vadd.f32 %v346, %v355
        %365 = vst [vmem:[%s246] sm:$0xff] %v357
        %366 = vst [vmem:[%s246 + $0x8] sm:$0xff] %v358
        %367 = vst [vmem:[%s246 + $0x10] sm:$0xff] %v359
        %368 = vst [vmem:[%s246 + $0x18] sm:$0xff] %v360
        %369 = vst [vmem:[%s246 + $0x20] sm:$0xff] %v361
        %370 = vst [vmem:[%s246 + $0x28] sm:$0xff] %v362
        %371 = vst [vmem:[%s246 + $0x30] sm:$0xff] %v363
        %372 = vst [vmem:[%s246 + $0x38] sm:$0xff] %v364
        %s373 = sand.u32 %s106, 1
        %s374 = scalar_lea.sflag [#allocation4], %s373
        %s375 = sand.u32 %s106, 1
        %s376 = smul.addr %s375, 64
        %s377 = scalar_lea.vmem [#allocation5], %s376
        // Predicated region
        $region37: #{tpu_custom_call.1} parent=31 // pred_check
          %p378 = pneg %p116
        $region38: #{tpu_custom_call.1} parent=31 // pred_check_branch
          %380 = sbr.rel (%p378) target = $region40
        $region39: #{tpu_custom_call.1} parent=31 // pred_region
          #allocation9 [shape = 'u32[6]{0}', space=smem, size = 0x18, scoped, tag = 'DMA stride descriptor']
          %s381 = smul.u32 2, %s20
          %s383 = ssub.s32 1024, 1024
          %384 = vsyncadd %s374, %s383
          %s385 = smul.addr %s381, 2
          %s386 = smul.addr %s385, 128
          %s387 = scalar_lea.hbm %s3, %s386
          %s389 = sshll.u32 1, 14
          %s390 = sxor.u32 4294967295, %s389
          %s393 = sshll.u32 7, 18
          %s394 = sxor.u32 4294967295, %s393
          %s395 = sand.u32 0, %s394
          %s397 = sor.u32 %s395, 0
          %s398 = sshll.u32 %s377, 4
          %s399 = int_to_ptr.vmem [resolvable:$true] %s398
          %405 = sst [smem:[#allocation9]] 512
          %s406 = scalar_lea.smem [#allocation9], 1
          %407 = sst [smem:[%s406]] 2048
          %s408 = scalar_lea.smem [#allocation9], 2
          %409 = sst [smem:[%s408]] 2
          %s410 = scalar_lea.smem [#allocation9], 3
          %411 = sst [smem:[%s410]] 256
          %s412 = scalar_lea.smem [#allocation9], 4
          %413 = sst [smem:[%s412]] 256
          %s414 = scalar_lea.smem [#allocation9], 5
          %415 = sst [smem:[%s414]] 16
          %417 = dma.general %s399, 1024, %s387, %s374, 131072, [#allocation9], %s397, 0
        $region40: #{tpu_custom_call.1} parent=31 // pred_fallthru
          _
      $region32: #{tpu_custom_call.1} parent=5 // pred_fallthru
        _
      %p418 = scmp.le.s32.totalorder 2, %s15
      // Predicated region
      $region41: #{tpu_custom_call.1} parent=5 // pred_check
        %p419 = pneg %p418
      $region42: #{tpu_custom_call.1} parent=5 // pred_check_branch
        %421 = sbr.rel (%p419) target = $region44
      $region43: #{tpu_custom_call.1} parent=5 // pred_region
        %s422 = ssub.s32 %s15, 2
        // Predicated region
        $region45: #{tpu_custom_call.1} parent=43 // pred_check
          %p423 = pneg %p122
        $region46: #{tpu_custom_call.1} parent=43 // pred_check_branch
          %425 = sbr.rel (%p423) target = $region48
        $region47: #{tpu_custom_call.1} parent=43 // pred_region
          %s426 = sand.u32 %s107, 1
          %s427 = scalar_lea.sflag [#allocation4], %s426
          %s428 = sand.u32 %s107, 1
          %s429 = smul.addr %s428, 64
          %s430 = scalar_lea.vmem [#allocation5], %s429
          %431 = dma.done %s427, 1024
        $region48: #{tpu_custom_call.1} parent=43 // pred_fallthru
          _
      $region44: #{tpu_custom_call.1} parent=5 // pred_fallthru
        _
    $region6: #{tpu_custom_call.1} parent=1 // loop_footer
      %s19 = sadd.s32 1, %s15
    $region7: #{tpu_custom_call.1} parent=1 // loop_footer_branch
      %14 = sbr.rel target = $region3
    $region8: #{tpu_custom_call.1} parent=1 // loop_exit
      _
    %432 = vsyncpa [#allocation3], 1
    %s433 = scalar_lea.sflag [#allocation3], 1
    %434 = vsyncpa %s433, 1
    %435 = vsyncpa [#allocation4], 1
    %s436 = scalar_lea.sflag [#allocation4], 1
    %437 = vsyncpa %s436, 1

</llo_original>
